<compile_context>
chip_gen: v6e
topology: v6e:2x2x1
jax: 0.10.0
libtpu: 0.0.40
codegen_flags: <defaults>
</compile_context>

<pallas_src>
import jax
import jax.numpy as jnp
from jax.experimental import pallas as pl
from jax.experimental.pallas import tpu as pltpu

N_EMBD = 96
C_PAD = 128            # lane-dense padded channel dim
HIDDEN = N_EMBD * 4    # 384 (already 3 x 128 -> lane aligned)
DROP_OUT = 0.1         # TODO(synk): dropout implemented as identity (eval-mode);
                       # training-mode masking would use pltpu.prng_seed/prng_random_bits
                       # in-kernel on the output tile.


def _round_up(x, m):
    return (x + m - 1) // m * m


def _ffn_kernel(x_ref, w1_ref, b1_ref, w2_ref, b2_ref, o_ref):
    # x_ref : (TILE_M, 128) bf16      w1_ref: (128, 384) bf16   b1_ref: (1, 384) f32
    # w2_ref: (384, 128) bf16         b2_ref: (1, 128) f32      o_ref : (TILE_M, 128)
    h = jnp.dot(x_ref[...], w1_ref[...], preferred_element_type=jnp.float32)
    h = jnp.maximum(h + b1_ref[...], 0.0)                      # bias + ReLU in f32
    o = jnp.dot(h.astype(jnp.bfloat16), w2_ref[...],
                preferred_element_type=jnp.float32) + b2_ref[...]
    o_ref[...] = o.astype(o_ref.dtype)


def feedforward(x, w1, b1, w2, b2, *, tile_m=1024):
    """x: (B, T, n_embd) -> (B, T, n_embd)."""
    B, T, C = x.shape
    assert C == N_EMBD
    M = B * T
    # Tile the token dim; clamp to the (8-rounded) problem size for tiny inputs.
    Mt = min(tile_m, _round_up(M, 8))
    grid_m = pl.cdiv(M, Mt)

    x2d = x.reshape(M, C)
    # Zero-pad lane dim 96 -> 128 (zero rows/cols contribute nothing to the math).
    xp = jnp.pad(x2d, ((0, 0), (0, C_PAD - C))).astype(jnp.bfloat16)   # (M, 128)
    w1p = jnp.pad(w1, ((0, C_PAD - C), (0, 0))).astype(jnp.bfloat16)   # (128, 384)
    w2p = jnp.pad(w2, ((0, 0), (0, C_PAD - C))).astype(jnp.bfloat16)   # (384, 128)
    b2p = jnp.pad(b2, ((0, 0), (0, C_PAD - C)))                        # (1, 128) f32

    cost = pl.CostEstimate(
        flops=2 * M * (C_PAD * HIDDEN + HIDDEN * C_PAD),
        transcendentals=0,
        bytes_accessed=int(xp.size * 2 + M * C_PAD * x.dtype.itemsize
                           + w1p.size * 2 + w2p.size * 2
                           + b1.size * 4 + b2p.size * 4),
    )

    out = pl.pallas_call(
        _ffn_kernel,
        out_shape=jax.ShapeDtypeStruct((M, C_PAD), x.dtype),
        grid=(grid_m,),
        in_specs=[
            pl.BlockSpec((Mt, C_PAD), lambda i: (i, 0)),       # x tile (pipelined)
            pl.BlockSpec((C_PAD, HIDDEN), lambda i: (0, 0)),   # w1 (resident)
            pl.BlockSpec((1, HIDDEN), lambda i: (0, 0)),       # b1 (resident)
            pl.BlockSpec((HIDDEN, C_PAD), lambda i: (0, 0)),   # w2 (resident)
            pl.BlockSpec((1, C_PAD), lambda i: (0, 0)),        # b2 (resident)
        ],
        out_specs=pl.BlockSpec((Mt, C_PAD), lambda i: (i, 0)),
        compiler_params=pltpu.CompilerParams(
            dimension_semantics=("parallel",),
        ),
        cost_estimate=cost,
    )(xp, w1p, b1, w2p, b2p)

    return out[:, :C].reshape(B, T, C)


def init_params(key, n_embd=N_EMBD):
    """Deterministic init matching nn.Linear default (uniform(-1/sqrt(fan_in), +...))."""
    k1, k2, k3, k4 = jax.random.split(key, 4)
    hid = n_embd * 4
    bound1 = 1.0 / jnp.sqrt(jnp.float32(n_embd))
    bound2 = 1.0 / jnp.sqrt(jnp.float32(hid))
    # Stored as (in_features, out_features): i.e. PyTorch weight transposed.
    w1 = jax.random.uniform(k1, (n_embd, hid), jnp.float32, -bound1, bound1)
    b1 = jax.random.uniform(k2, (1, hid), jnp.float32, -bound1, bound1)
    w2 = jax.random.uniform(k3, (hid, n_embd), jnp.float32, -bound2, bound2)
    b2 = jax.random.uniform(k4, (1, n_embd), jnp.float32, -bound2, bound2)
    return w1, b1, w2, b2


if __name__ == "__main__":
    key = jax.random.PRNGKey(0)
    kx, kp = jax.random.split(key)

    B, T = 2, 8
    x = jax.random.normal(kx, (B, T, N_EMBD), jnp.float32)
    w1, b1, w2, b2 = init_params(kp)

    out = feedforward(x, w1, b1, w2, b2)
    jax.block_until_ready(out)

    # Reference mimicking the kernel's bf16-input / f32-accumulate matmuls
    # (dropout in eval mode == identity).
    def bf(a):
        return a.astype(jnp.bfloat16).astype(jnp.float32)

    h_ref = jnp.maximum(bf(x.reshape(-1, N_EMBD)) @ bf(w1) + b1, 0.0)
    ref = (bf(h_ref) @ bf(w2) + b2).reshape(B, T, N_EMBD)
    assert jnp.allclose(out, ref, atol=1e-3, rtol=1e-3), float(
        jnp.max(jnp.abs(out - ref)))

    # Sanity check vs the full-f32 math too (loose tolerance for bf16 matmuls).
    ref_f32 = (jnp.maximum(x.reshape(-1, N_EMBD) @ w1 + b1, 0.0) @ w2 + b2
               ).reshape(B, T, N_EMBD)
    assert jnp.allclose(out, ref_f32, atol=3e-2, rtol=3e-2)

    print("KERNEL_OK")
</pallas_src>

<mosaic_0001>
module attributes {stable_mosaic.version = 11 : i64} {
  func.func @_ffn_kernel(%arg0: i32, %arg1: memref<16x128xbf16, #tpu.memory_space<vmem>>, %arg2: memref<128x384xbf16, #tpu.memory_space<vmem>>, %arg3: memref<1x384xf32, #tpu.memory_space<vmem>>, %arg4: memref<384x128xbf16, #tpu.memory_space<vmem>>, %arg5: memref<1x128xf32, #tpu.memory_space<vmem>>, %arg6: memref<16x128xf32, #tpu.memory_space<vmem>>) attributes {dimension_semantics = [#tpu.dimension_semantics<parallel>], iteration_bounds = array<i64: 1>, scalar_prefetch = 0 : i64, scratch_operands = 0 : i64, tpu.core_type = #tpu.core_type<tc>, window_params = [{transform_indices = @transform_0, window_bounds = array<i64: 16, 128>}, {pipeline_mode = #tpu.pipeline_mode<synchronous>, transform_indices = @transform_1, window_bounds = array<i64: 128, 384>}, {pipeline_mode = #tpu.pipeline_mode<synchronous>, transform_indices = @transform_2, window_bounds = array<i64: 1, 384>}, {pipeline_mode = #tpu.pipeline_mode<synchronous>, transform_indices = @transform_3, window_bounds = array<i64: 384, 128>}, {pipeline_mode = #tpu.pipeline_mode<synchronous>, transform_indices = @transform_4, window_bounds = array<i64: 1, 128>}, {transform_indices = @transform_5, window_bounds = array<i64: 16, 128>}]} {
    %c0 = arith.constant 0 : index
    %c0_0 = arith.constant 0 : index
    %0 = vector.load %arg1[%c0, %c0_0] : memref<16x128xbf16, #tpu.memory_space<vmem>>, vector<16x128xbf16>
    %c0_1 = arith.constant 0 : index
    %c0_2 = arith.constant 0 : index
    %1 = vector.load %arg2[%c0_1, %c0_2] : memref<128x384xbf16, #tpu.memory_space<vmem>>, vector<128x384xbf16>
    %cst = arith.constant dense<0.000000e+00> : vector<16x384xf32>
    %2 = tpu.matmul %0, %1, %cst {dimension_numbers = #tpu.dot_dimension_numbers<[1], [0], [0], [1], [0, 0, 1, 1], [], []>} : vector<16x128xbf16>, vector<128x384xbf16>, vector<16x384xf32> -> vector<16x384xf32>
    %c0_3 = arith.constant 0 : index
    %c0_4 = arith.constant 0 : index
    %3 = vector.load %arg3[%c0_3, %c0_4] : memref<1x384xf32, #tpu.memory_space<vmem>>, vector<1x384xf32>
    %4 = vector.broadcast %3 : vector<1x384xf32> to vector<16x384xf32>
    %5 = arith.addf %2, %4 : vector<16x384xf32>
    %cst_5 = arith.constant 0.000000e+00 : f32
    %6 = vector.broadcast %cst_5 : f32 to vector<16x384xf32>
    %7 = arith.maximumf %5, %6 : vector<16x384xf32>
    %8 = arith.truncf %7 : vector<16x384xf32> to vector<16x384xbf16>
    %c0_6 = arith.constant 0 : index
    %c0_7 = arith.constant 0 : index
    %9 = vector.load %arg4[%c0_6, %c0_7] : memref<384x128xbf16, #tpu.memory_space<vmem>>, vector<384x128xbf16>
    %cst_8 = arith.constant dense<0.000000e+00> : vector<16x128xf32>
    %10 = tpu.matmul %8, %9, %cst_8 {dimension_numbers = #tpu.dot_dimension_numbers<[1], [0], [0], [1], [0, 0, 1, 1], [], []>} : vector<16x384xbf16>, vector<384x128xbf16>, vector<16x128xf32> -> vector<16x128xf32>
    %c0_9 = arith.constant 0 : index
    %c0_10 = arith.constant 0 : index
    %11 = vector.load %arg5[%c0_9, %c0_10] : memref<1x128xf32, #tpu.memory_space<vmem>>, vector<1x128xf32>
    %12 = vector.broadcast %11 : vector<1x128xf32> to vector<16x128xf32>
    %13 = arith.addf %10, %12 : vector<16x128xf32>
    %c0_11 = arith.constant 0 : index
    %c0_12 = arith.constant 0 : index
    %14 = vector.load %arg6[%c0_11, %c0_12] : memref<16x128xf32, #tpu.memory_space<vmem>>, vector<16x128xf32>
    tpu.vector_store %arg6[%c0_11, %c0_12], %13 {strides = array<i32>} : memref<16x128xf32, #tpu.memory_space<vmem>>, vector<16x128xf32>,
    return
  }
  func.func @transform_0(%arg0: i32) -> (i32, i32) {
    %c0_i32 = arith.constant 0 : i32
    %c0_i32_0 = arith.constant 0 : i32
    return %arg0, %c0_i32 : i32, i32
  }
  func.func @transform_1(%arg0: i32) -> (i32, i32) {
    %c0_i32 = arith.constant 0 : i32
    %c0_i32_0 = arith.constant 0 : i32
    %c0_i32_1 = arith.constant 0 : i32
    return %c0_i32, %c0_i32_0 : i32, i32
  }
  func.func @transform_2(%arg0: i32) -> (i32, i32) {
    %c0_i32 = arith.constant 0 : i32
    %c0_i32_0 = arith.constant 0 : i32
    %c0_i32_1 = arith.constant 0 : i32
    return %c0_i32, %c0_i32_0 : i32, i32
  }
  func.func @transform_3(%arg0: i32) -> (i32, i32) {
    %c0_i32 = arith.constant 0 : i32
    %c0_i32_0 = arith.constant 0 : i32
    %c0_i32_1 = arith.constant 0 : i32
    return %c0_i32, %c0_i32_0 : i32, i32
  }
  func.func @transform_4(%arg0: i32) -> (i32, i32) {
    %c0_i32 = arith.constant 0 : i32
    %c0_i32_0 = arith.constant 0 : i32
    %c0_i32_1 = arith.constant 0 : i32
    return %c0_i32, %c0_i32_0 : i32, i32
  }
  func.func @transform_5(%arg0: i32) -> (i32, i32) {
    %c0_i32 = arith.constant 0 : i32
    %c0_i32_0 = arith.constant 0 : i32
    return %arg0, %c0_i32 : i32, i32
  }
}

</mosaic_0001>

<llo_original>
// kernel: tpu_custom_call.1
$region0: #{tpu_custom_call.1}
  #allocation0 [shape = 'u32[]', space=smem, size = 0x4, offset = 0x4, fixed_abs, tag = 'smem constant byte address 0x4 - core index']
  #allocation1 [shape = 'u32[144,128]{1,0:T(1,128)}', space=vmem, size = 0x12000, scoped, tag = 'internal scratch']
  %s0 = inlined_call_operand.hbm [shape: bf16[16,128], index: 0, kind: input, shape index: {}]
  %s1 = inlined_call_operand.hbm [shape: bf16[128,384], index: 1, kind: input, shape index: {}]
  %s2 = inlined_call_operand.vmem [shape: f32[1,384], index: 2, kind: input, shape index: {}]
  %s3 = inlined_call_operand.hbm [shape: bf16[384,128], index: 3, kind: input, shape index: {}]
  %s4 = inlined_call_operand.vmem [shape: f32[1,128], index: 4, kind: input, shape index: {}]
  %s5 = inlined_call_operand.hbm [shape: f32[16,128], index: 5, kind: output, shape index: {}]
  %s6 = sld [smem:[#allocation0]]
  $region42: #{tpu_custom_call.1} parent=0
    _
  %s8 = ssub.s32 1, %s6
  %s9 = scalar_select 0, %s8, %s6
  $region1: #{tpu_custom_call.1} parent=0
    #allocation2 [shape = 'u8[4096]{0}', space=vmem, size = 0x1000, scoped, tag = 'input window, operand 0, single buffered']
    #allocation3 [shape = 's32[1]{0}', space=sflag, size = 0x4, scoped, tag = 'scoped memory for tpu_custom_call.1']
    #allocation4 [shape = 's32[1]{0}', space=sflag, size = 0x4, scoped, tag = 'scoped memory for tpu_custom_call.1']
    #allocation5 [shape = 'u8[98304]{0}', space=vmem, size = 0x18000, scoped, tag = 'input window, operand 1, single buffered']
    #allocation6 [shape = 's32[1]{0}', space=sflag, size = 0x4, scoped, tag = 'scoped memory for tpu_custom_call.1']
    #allocation7 [shape = 'u8[98304]{0}', space=vmem, size = 0x18000, scoped, tag = 'input window, operand 3, single buffered']
    #allocation8 [shape = 'u8[8192]{0}', space=vmem, size = 0x2000, scoped, tag = 'output window, operand 0, single buffered']
    %10 = vsyncpa [#allocation3], 0
    %11 = vsyncpa [#allocation6], 0
    %12 = vsyncpa [#allocation4], 0
    // Predicated region
    $region2: #{tpu_custom_call.1} parent=1 // pred_check
      _
    $region3: #{tpu_custom_call.1} parent=1 // pred_check_branch
      %14 = sbr.rel (0) target = $region5
    $region4: #{tpu_custom_call.1} parent=1 // pred_region
      %s16 = ssub.s32 128, 128
      %17 = vsyncadd [#allocation3], %s16
      %s18 = sshll.u32 [#allocation2], 4
      %s19 = int_to_ptr.vmem [resolvable:$true] %s18
      %24 = dma.hbm_to_vmem [thread:$0]  %s0, 128, %s19, [#allocation3], 64, 64, 4
    $region5: #{tpu_custom_call.1} parent=1 // pred_fallthru
      _
    // Predicated region
    $region6: #{tpu_custom_call.1} parent=1 // pred_check
      _
    $region7: #{tpu_custom_call.1} parent=1 // pred_check_branch
      %26 = sbr.rel (0) target = $region9
    $region8: #{tpu_custom_call.1} parent=1 // pred_region
      %s28 = ssub.s32 3072, 3072
      %29 = vsyncadd [#allocation6], %s28
      %s30 = sshll.u32 [#allocation5], 4
      %s31 = int_to_ptr.vmem [resolvable:$true] %s30
      %36 = dma.hbm_to_vmem [thread:$0]  %s1, 3072, %s31, [#allocation6], 192, 192, 12
    $region9: #{tpu_custom_call.1} parent=1 // pred_fallthru
      _
    // Predicated region
    $region10: #{tpu_custom_call.1} parent=1 // pred_check
      _
    $region11: #{tpu_custom_call.1} parent=1 // pred_check_branch
      %38 = sbr.rel (0) target = $region13
    $region12: #{tpu_custom_call.1} parent=1 // pred_region
      _
    $region13: #{tpu_custom_call.1} parent=1 // pred_fallthru
      _
    // Predicated region
    $region14: #{tpu_custom_call.1} parent=1 // pred_check
      _
    $region15: #{tpu_custom_call.1} parent=1 // pred_check_branch
      %40 = sbr.rel (0) target = $region17
    $region16: #{tpu_custom_call.1} parent=1 // pred_region
      %s42 = ssub.s32 3072, 3072
      %43 = vsyncadd [#allocation6], %s42
      %s44 = sshll.u32 [#allocation7], 4
      %s45 = int_to_ptr.vmem [resolvable:$true] %s44
      %50 = dma.hbm_to_vmem [thread:$0]  %s3, 3072, %s45, [#allocation6], 64, 64, 4
    $region17: #{tpu_custom_call.1} parent=1 // pred_fallthru
      _
    // Predicated region
    $region18: #{tpu_custom_call.1} parent=1 // pred_check
      _
    $region19: #{tpu_custom_call.1} parent=1 // pred_check_branch
      %52 = sbr.rel (0) target = $region21
    $region20: #{tpu_custom_call.1} parent=1 // pred_region
      _
    $region21: #{tpu_custom_call.1} parent=1 // pred_fallthru
      _
    // Predicated region
    $region22: #{tpu_custom_call.1} parent=1 // pred_check
      _
    $region23: #{tpu_custom_call.1} parent=1 // pred_check_branch
      %54 = sbr.rel (0) target = $region25
    $region24: #{tpu_custom_call.1} parent=1 // pred_region
      %55 = dma.done [#allocation3], 128
    $region25: #{tpu_custom_call.1} parent=1 // pred_fallthru
      _
    // Predicated region
    $region26: #{tpu_custom_call.1} parent=1 // pred_check
      _
    $region27: #{tpu_custom_call.1} parent=1 // pred_check_branch
      %57 = sbr.rel (0) target = $region29
    $region28: #{tpu_custom_call.1} parent=1 // pred_region
      %58 = dma.done [#allocation6], 3072
    $region29: #{tpu_custom_call.1} parent=1 // pred_fallthru
      _
    // Predicated region
    $region30: #{tpu_custom_call.1} parent=1 // pred_check
      _
    $region31: #{tpu_custom_call.1} parent=1 // pred_check_branch
      %60 = sbr.rel (0) target = $region33
    $region32: #{tpu_custom_call.1} parent=1 // pred_region
      %61 = dma.done [#allocation6], 3072
    $region33: #{tpu_custom_call.1} parent=1 // pred_fallthru
      _
    %v63 = vld [vmem:[#allocation2] sm:$0xf]
    %v64 = vld [vmem:[#allocation2 + $0x4] sm:$0xf]
    %v65 = vld [vmem:[#allocation5] sm:$0xff]
    %v66 = vld [vmem:[#allocation5 + $0x8] sm:$0xf]
    %v67 = vld [vmem:[#allocation5 + $0xc] sm:$0xff]
    %v68 = vld [vmem:[#allocation5 + $0x14] sm:$0xf]
    %v69 = vld [vmem:[#allocation5 + $0x18] sm:$0xff]
    %v70 = vld [vmem:[#allocation5 + $0x20] sm:$0xf]
    %v71 = vld [vmem:[#allocation5 + $0x24] sm:$0xff]
    %v72 = vld [vmem:[#allocation5 + $0x2c] sm:$0xf]
    %v73 = vld [vmem:[#allocation5 + $0x30] sm:$0xff]
    %v74 = vld [vmem:[#allocation5 + $0x38] sm:$0xf]
    %v75 = vld [vmem:[#allocation5 + $0x3c] sm:$0xff]
    %v76 = vld [vmem:[#allocation5 + $0x44] sm:$0xf]
    %v77 = vld [vmem:[#allocation5 + $0x48] sm:$0xff]
    %v78 = vld [vmem:[#allocation5 + $0x50] sm:$0xf]
    %v79 = vld [vmem:[#allocation5 + $0x54] sm:$0xff]
    %v80 = vld [vmem:[#allocation5 + $0x5c] sm:$0xf]
    %v81 = vld [vmem:[#allocation5 + $0x60] sm:$0xff]
    %v82 = vld [vmem:[#allocation5 + $0x68] sm:$0xf]
    %v83 = vld [vmem:[#allocation5 + $0x6c] sm:$0xff]
    %v84 = vld [vmem:[#allocation5 + $0x74] sm:$0xf]
    %v85 = vld [vmem:[#allocation5 + $0x78] sm:$0xff]
    %v86 = vld [vmem:[#allocation5 + $0x80] sm:$0xf]
    %v87 = vld [vmem:[#allocation5 + $0x84] sm:$0xff]
    %v88 = vld [vmem:[#allocation5 + $0x8c] sm:$0xf]
    %v89 = vld [vmem:[#allocation5 + $0x90] sm:$0xff]
    %v90 = vld [vmem:[#allocation5 + $0x98] sm:$0xf]
    %v91 = vld [vmem:[#allocation5 + $0x9c] sm:$0xff]
    %v92 = vld [vmem:[#allocation5 + $0xa4] sm:$0xf]
    %v93 = vld [vmem:[#allocation5 + $0xa8] sm:$0xff]
    %v94 = vld [vmem:[#allocation5 + $0xb0] sm:$0xf]
    %v95 = vld [vmem:[#allocation5 + $0xb4] sm:$0xff]
    %v96 = vld [vmem:[#allocation5 + $0xbc] sm:$0xf]
    %v97 = vld [vmem:[%s2] sm:$0x7]
    %v99 = vlaneseq
    %v100 = vshrl.u32 %v99, 7
    %v101 = vsub.s32 0, %v100
    %v102 = vrot.slane %v97, %v101
    %v103 = vlaneseq
    %v104 = vshrl.u32 %v103, 7
    %v105 = vsub.s32 1, %v104
    %v106 = vrot.slane %v97, %v105
    %v107 = vlaneseq
    %v108 = vshrl.u32 %v107, 7
    %v109 = vsub.s32 2, %v108
    %v110 = vrot.slane %v97, %v109
    %v116 = vunpack.c.l.b16 %v63
    %v117 = vunpack.c.l.b16 %v64
    %v118 = vpack.c.b16 %v117, %v116
    %v152 = vunpack.c.l.b16 %v65
    %v153 = vunpack.c.h.b16 %v65
    %v154 = vunpack.c.l.b16 %v66
    %v155 = vunpack.c.l.b16 %v67
    %v156 = vunpack.c.h.b16 %v67
    %v157 = vunpack.c.l.b16 %v68
    %v158 = vunpack.c.l.b16 %v69
    %v159 = vunpack.c.h.b16 %v69
    %v160 = vunpack.c.l.b16 %v70
    %v161 = vunpack.c.l.b16 %v71
    %v162 = vunpack.c.h.b16 %v71
    %v163 = vunpack.c.l.b16 %v72
    %v164 = vunpack.c.l.b16 %v73
    %v165 = vunpack.c.h.b16 %v73
    %v166 = vunpack.c.l.b16 %v74
    %v167 = vunpack.c.l.b16 %v75
    %v168 = vunpack.c.h.b16 %v75
    %v169 = vunpack.c.l.b16 %v76
    %v170 = vunpack.c.l.b16 %v77
    %v171 = vunpack.c.h.b16 %v77
    %v172 = vunpack.c.l.b16 %v78
    %v173 = vunpack.c.l.b16 %v79
    %v174 = vunpack.c.h.b16 %v79
    %v175 = vunpack.c.l.b16 %v80
    %v176 = vunpack.c.l.b16 %v81
    %v177 = vunpack.c.h.b16 %v81
    %v178 = vunpack.c.l.b16 %v82
    %v179 = vunpack.c.l.b16 %v83
    %v180 = vunpack.c.h.b16 %v83
    %v181 = vunpack.c.l.b16 %v84
    %v182 = vunpack.c.l.b16 %v85
    %v183 = vunpack.c.h.b16 %v85
    %v184 = vunpack.c.l.b16 %v86
    %v185 = vunpack.c.l.b16 %v87
    %v186 = vunpack.c.h.b16 %v87
    %v187 = vunpack.c.l.b16 %v88
    %v188 = vunpack.c.l.b16 %v89
    %v189 = vunpack.c.h.b16 %v89
    %v190 = vunpack.c.l.b16 %v90
    %v191 = vunpack.c.l.b16 %v91
    %v192 = vunpack.c.h.b16 %v91
    %v193 = vunpack.c.l.b16 %v92
    %v194 = vunpack.c.l.b16 %v93
    %v195 = vunpack.c.h.b16 %v93
    %v196 = vunpack.c.l.b16 %v94
    %v197 = vunpack.c.l.b16 %v95
    %v198 = vunpack.c.h.b16 %v95
    %v199 = vunpack.c.l.b16 %v96
    %v200 = vpack.c.b16 %v155, %v152
    %v201 = vpack.c.b16 %v156, %v153
    %v202 = vpack.c.b16 %v157, %v154
    %v203 = vpack.c.b16 %v161, %v158
    %v204 = vpack.c.b16 %v162, %v159
    %v205 = vpack.c.b16 %v163, %v160
    %v206 = vpack.c.b16 %v167, %v164
    %v207 = vpack.c.b16 %v168, %v165
    %v208 = vpack.c.b16 %v169, %v166
    %v209 = vpack.c.b16 %v173, %v170
    %v210 = vpack.c.b16 %v174, %v171
    %v211 = vpack.c.b16 %v175, %v172
    %v212 = vpack.c.b16 %v179, %v176
    %v213 = vpack.c.b16 %v180, %v177
    %v214 = vpack.c.b16 %v181, %v178
    %v215 = vpack.c.b16 %v185, %v182
    %v216 = vpack.c.b16 %v186, %v183
    %v217 = vpack.c.b16 %v187, %v184
    %v218 = vpack.c.b16 %v191, %v188
    %v219 = vpack.c.b16 %v192, %v189
    %v220 = vpack.c.b16 %v193, %v190
    %v221 = vpack.c.b16 %v197, %v194
    %v222 = vpack.c.b16 %v198, %v195
    %v223 = vpack.c.b16 %v199, %v196
    %248 = vmatprep.subr.bf16.mxu0 %v222
    %249 = vmatpush1.bf16.msra.mxu0 %v221
    %250 = vmatprep.subr.bf16.mxu0 %v219
    %251 = vmatpush1.bf16.msra.mxu0 %v218
    %252 = vmatprep.subr.bf16.mxu0 %v216
    %253 = vmatpush1.bf16.msra.mxu0 %v215
    %254 = vmatprep.subr.bf16.mxu0 %v213
    %255 = vmatpush1.bf16.msra.mxu0 %v212
    %256 = vmatprep.subr.bf16.mxu0 %v210
    %257 = vmatpush1.bf16.msra.mxu0 %v209
    %258 = vmatprep.subr.bf16.mxu0 %v207
    %259 = vmatpush1.bf16.msra.mxu0 %v206
    %260 = vmatprep.subr.bf16.mxu0 %v204
    %261 = vmatpush1.bf16.msra.mxu0 %v203
    %262 = vmatprep.subr.bf16.mxu0 %v201
    %263 = vmatpush1.bf16.msra.mxu0 %v200
    %264 = vmatprep.subr.bf16.mxu0 0
    %265 = vmatpush2.bf16.msra.mxu0 0
    %266 = vmatprep.subr.bf16.mxu0 0
    %267 = vmatpush2.bf16.msra.mxu0 0
    %268 = vmatprep.subr.bf16.mxu0 0
    %269 = vmatpush2.bf16.msra.mxu0 0
    %270 = vmatprep.subr.bf16.mxu0 0
    %271 = vmatpush2.bf16.msra.mxu0 0
    %272 = vmatprep.subr.bf16.mxu0 0
    %273 = vmatpush2.bf16.msra.mxu0 0
    %274 = vmatprep.subr.bf16.mxu0 0
    %275 = vmatpush2.bf16.msra.mxu0 0
    %276 = vmatprep.subr.bf16.mxu0 0
    %277 = vmatpush2.bf16.msra.mxu0 0
    %278 = vmatprep.subr.bf16.mxu0 0
    %279 = vmatpush2.bf16.msra.mxu0 0
    %280 = vmatprep.mubr.bf16.mxu0 0
    %281 = vmatmul.mubr.bf16.gmra.mxu0 %v118
    %v282 = vpop.f32.mrf.mxu0
    %v283 = vadd.f32 %v102, %v282
    %v284 = vpop.f32.mrf.mxu0
    %v285 = vadd.f32 %v106, %v284
    %v286 = vpop.f32.mrf.mxu0
    %v287 = vadd.f32 %v102, %v286
    %v288 = vpop.f32.mrf.mxu0
    %v289 = vadd.f32 %v106, %v288
    %290 = vdwg.mxu0
    %291 = vmatprep.subr.bf16.mxu0 0
    %292 = vmatpush1.bf16.msra.mxu0 %v223
    %293 = vmatprep.subr.bf16.mxu0 0
    %294 = vmatpush1.bf16.msra.mxu0 %v220
    %295 = vmatprep.subr.bf16.mxu0 0
    %296 = vmatpush1.bf16.msra.mxu0 %v217
    %297 = vmatprep.subr.bf16.mxu0 0
    %298 = vmatpush1.bf16.msra.mxu0 %v214
    %299 = vmatprep.subr.bf16.mxu0 0
    %300 = vmatpush1.bf16.msra.mxu0 %v211
    %301 = vmatprep.subr.bf16.mxu0 0
    %302 = vmatpush1.bf16.msra.mxu0 %v208
    %303 = vmatprep.subr.bf16.mxu0 0
    %304 = vmatpush1.bf16.msra.mxu0 %v205
    %305 = vmatprep.subr.bf16.mxu0 0
    %306 = vmatpush1.bf16.msra.mxu0 %v202
    %307 = vmatprep.subr.bf16.mxu0 0
    %308 = vmatpush2.bf16.msra.mxu0 0
    %309 = vmatprep.subr.bf16.mxu0 0
    %310 = vmatpush2.bf16.msra.mxu0 0
    %311 = vmatprep.subr.bf16.mxu0 0
    %312 = vmatpush2.bf16.msra.mxu0 0
    %313 = vmatprep.subr.bf16.mxu0 0
    %314 = vmatpush2.bf16.msra.mxu0 0
    %315 = vmatprep.subr.bf16.mxu0 0
    %316 = vmatpush2.bf16.msra.mxu0 0
    %317 = vmatprep.subr.bf16.mxu0 0
    %318 = vmatpush2.bf16.msra.mxu0 0
    %319 = vmatprep.subr.bf16.mxu0 0
    %320 = vmatpush2.bf16.msra.mxu0 0
    %321 = vmatprep.subr.bf16.mxu0 0
    %322 = vmatpush2.bf16.msra.mxu0 0
    %323 = vmatprep.mubr.bf16.mxu0 0
    %324 = vmatmul.mubr.bf16.gmra.mxu0 %v118
    %v325 = vpop.f32.mrf.mxu0
    %v326 = vadd.f32 %v110, %v325
    %v327 = vpop.f32.mrf.mxu0
    %v328 = vpop.f32.mrf.mxu0
    %v329 = vadd.f32 %v110, %v328
    %v330 = vpop.f32.mrf.mxu0
    %331 = vdwg.mxu0
    %v332 = vmax.f32 %v283, 0.0
    %v333 = vmax.f32 %v285, 0.0
    %v334 = vmax.f32 %v326, 0.0
    %v335 = vmax.f32 %v287, 0.0
    %v336 = vmax.f32 %v289, 0.0
    %v337 = vmax.f32 %v329, 0.0
    %v338 = vpack.c.bf16 %v335, %v332
    %v339 = vpack.c.bf16 %v336, %v333
    %v340 = vpack.c.bf16 %v337, %v334
    %v341 = vld [vmem:[#allocation7] sm:$0xf]
    %v342 = vld [vmem:[#allocation7 + $0x4] sm:$0xf]
    %v343 = vld [vmem:[#allocation7 + $0x8] sm:$0xf]
    %v344 = vld [vmem:[#allocation7 + $0xc] sm:$0xf]
    %v345 = vld [vmem:[#allocation7 + $0x10] sm:$0xf]
    %v346 = vld [vmem:[#allocation7 + $0x14] sm:$0xf]
    %v347 = vld [vmem:[#allocation7 + $0x18] sm:$0xf]
    %v348 = vld [vmem:[#allocation7 + $0x1c] sm:$0xf]
    %v349 = vld [vmem:[#allocation7 + $0x20] sm:$0xf]
    %v350 = vld [vmem:[#allocation7 + $0x24] sm:$0xf]
    %v351 = vld [vmem:[#allocation7 + $0x28] sm:$0xf]
    %v352 = vld [vmem:[#allocation7 + $0x2c] sm:$0xf]
    %v353 = vld [vmem:[#allocation7 + $0x30] sm:$0xf]
    %v354 = vld [vmem:[#allocation7 + $0x34] sm:$0xf]
    %v355 = vld [vmem:[#allocation7 + $0x38] sm:$0xf]
    %v356 = vld [vmem:[#allocation7 + $0x3c] sm:$0xf]
    %v357 = vld [vmem:[#allocation7 + $0x40] sm:$0xf]
    %v358 = vld [vmem:[#allocation7 + $0x44] sm:$0xf]
    %v359 = vld [vmem:[#allocation7 + $0x48] sm:$0xf]
    %v360 = vld [vmem:[#allocation7 + $0x4c] sm:$0xf]
    %v361 = vld [vmem:[#allocation7 + $0x50] sm:$0xf]
    %v362 = vld [vmem:[#allocation7 + $0x54] sm:$0xf]
    %v363 = vld [vmem:[#allocation7 + $0x58] sm:$0xf]
    %v364 = vld [vmem:[#allocation7 + $0x5c] sm:$0xf]
    %v365 = vld [vmem:[#allocation7 + $0x60] sm:$0xf]
    %v366 = vld [vmem:[#allocation7 + $0x64] sm:$0xf]
    %v367 = vld [vmem:[#allocation7 + $0x68] sm:$0xf]
    %v368 = vld [vmem:[#allocation7 + $0x6c] sm:$0xf]
    %v369 = vld [vmem:[#allocation7 + $0x70] sm:$0xf]
    %v370 = vld [vmem:[#allocation7 + $0x74] sm:$0xf]
    %v371 = vld [vmem:[#allocation7 + $0x78] sm:$0xf]
    %v372 = vld [vmem:[#allocation7 + $0x7c] sm:$0xf]
    %v373 = vld [vmem:[#allocation7 + $0x80] sm:$0xf]
    %v374 = vld [vmem:[#allocation7 + $0x84] sm:$0xf]
    %v375 = vld [vmem:[#allocation7 + $0x88] sm:$0xf]
    %v376 = vld [vmem:[#allocation7 + $0x8c] sm:$0xf]
    %v377 = vld [vmem:[#allocation7 + $0x90] sm:$0xf]
    %v378 = vld [vmem:[#allocation7 + $0x94] sm:$0xf]
    %v379 = vld [vmem:[#allocation7 + $0x98] sm:$0xf]
    %v380 = vld [vmem:[#allocation7 + $0x9c] sm:$0xf]
    %v381 = vld [vmem:[#allocation7 + $0xa0] sm:$0xf]
    %v382 = vld [vmem:[#allocation7 + $0xa4] sm:$0xf]
    %v383 = vld [vmem:[#allocation7 + $0xa8] sm:$0xf]
    %v384 = vld [vmem:[#allocation7 + $0xac] sm:$0xf]
    %v385 = vld [vmem:[#allocation7 + $0xb0] sm:$0xf]
    %v386 = vld [vmem:[#allocation7 + $0xb4] sm:$0xf]
    %v387 = vld [vmem:[#allocation7 + $0xb8] sm:$0xf]
    %v388 = vld [vmem:[#allocation7 + $0xbc] sm:$0xf]
    %v389 = vld [vmem:[%s4] sm:$0x1]
    %v391 = vlaneseq
    %v392 = vshrl.u32 %v391, 7
    %v393 = vsub.s32 0, %v392
    %v394 = vrot.slane %v389, %v393
    %v444 = vunpack.c.l.b16 %v341
    %v445 = vunpack.c.l.b16 %v342
    %v446 = vunpack.c.l.b16 %v343
    %v447 = vunpack.c.l.b16 %v344
    %v448 = vunpack.c.l.b16 %v345
    %v449 = vunpack.c.l.b16 %v346
    %v450 = vunpack.c.l.b16 %v347
    %v451 = vunpack.c.l.b16 %v348
    %v452 = vunpack.c.l.b16 %v349
    %v453 = vunpack.c.l.b16 %v350
    %v454 = vunpack.c.l.b16 %v351
    %v455 = vunpack.c.l.b16 %v352
    %v456 = vunpack.c.l.b16 %v353
    %v457 = vunpack.c.l.b16 %v354
    %v458 = vunpack.c.l.b16 %v355
    %v459 = vunpack.c.l.b16 %v356
    %v460 = vunpack.c.l.b16 %v357
    %v461 = vunpack.c.l.b16 %v358
    %v462 = vunpack.c.l.b16 %v359
    %v463 = vunpack.c.l.b16 %v360
    %v464 = vunpack.c.l.b16 %v361
    %v465 = vunpack.c.l.b16 %v362
    %v466 = vunpack.c.l.b16 %v363
    %v467 = vunpack.c.l.b16 %v364
    %v468 = vunpack.c.l.b16 %v365
    %v469 = vunpack.c.l.b16 %v366
    %v470 = vunpack.c.l.b16 %v367
    %v471 = vunpack.c.l.b16 %v368
    %v472 = vunpack.c.l.b16 %v369
    %v473 = vunpack.c.l.b16 %v370
    %v474 = vunpack.c.l.b16 %v371
    %v475 = vunpack.c.l.b16 %v372
    %v476 = vunpack.c.l.b16 %v373
    %v477 = vunpack.c.l.b16 %v374
    %v478 = vunpack.c.l.b16 %v375
    %v479 = vunpack.c.l.b16 %v376
    %v480 = vunpack.c.l.b16 %v377
    %v481 = vunpack.c.l.b16 %v378
    %v482 = vunpack.c.l.b16 %v379
    %v483 = vunpack.c.l.b16 %v380
    %v484 = vunpack.c.l.b16 %v381
    %v485 = vunpack.c.l.b16 %v382
    %v486 = vunpack.c.l.b16 %v383
    %v487 = vunpack.c.l.b16 %v384
    %v488 = vunpack.c.l.b16 %v385
    %v489 = vunpack.c.l.b16 %v386
    %v490 = vunpack.c.l.b16 %v387
    %v491 = vunpack.c.l.b16 %v388
    %v492 = vpack.c.b16 %v445, %v444
    %v493 = vpack.c.b16 %v447, %v446
    %v494 = vpack.c.b16 %v449, %v448
    %v495 = vpack.c.b16 %v451, %v450
    %v496 = vpack.c.b16 %v453, %v452
    %v497 = vpack.c.b16 %v455, %v454
    %v498 = vpack.c.b16 %v457, %v456
    %v499 = vpack.c.b16 %v459, %v458
    %v500 = vpack.c.b16 %v461, %v460
    %v501 = vpack.c.b16 %v463, %v462
    %v502 = vpack.c.b16 %v465, %v464
    %v503 = vpack.c.b16 %v467, %v466
    %v504 = vpack.c.b16 %v469, %v468
    %v505 = vpack.c.b16 %v471, %v470
    %v506 = vpack.c.b16 %v473, %v472
    %v507 = vpack.c.b16 %v475, %v474
    %v508 = vpack.c.b16 %v477, %v476
    %v509 = vpack.c.b16 %v479, %v478
    %v510 = vpack.c.b16 %v481, %v480
    %v511 = vpack.c.b16 %v483, %v482
    %v512 = vpack.c.b16 %v485, %v484
    %v513 = vpack.c.b16 %v487, %v486
    %v514 = vpack.c.b16 %v489, %v488
    %v515 = vpack.c.b16 %v491, %v490
    %540 = vmatprep.subr.bf16.mxu0 0
    %541 = vmatpush1.bf16.msra.mxu0 %v499
    %542 = vmatprep.subr.bf16.mxu0 0
    %543 = vmatpush1.bf16.msra.mxu0 %v498
    %544 = vmatprep.subr.bf16.mxu0 0
    %545 = vmatpush1.bf16.msra.mxu0 %v497
    %546 = vmatprep.subr.bf16.mxu0 0
    %547 = vmatpush1.bf16.msra.mxu0 %v496
    %548 = vmatprep.subr.bf16.mxu0 0
    %549 = vmatpush1.bf16.msra.mxu0 %v495
    %550 = vmatprep.subr.bf16.mxu0 0
    %551 = vmatpush1.bf16.msra.mxu0 %v494
    %552 = vmatprep.subr.bf16.mxu0 0
    %553 = vmatpush1.bf16.msra.mxu0 %v493
    %554 = vmatprep.subr.bf16.mxu0 0
    %555 = vmatpush1.bf16.msra.mxu0 %v492
    %556 = vmatprep.subr.bf16.mxu0 0
    %557 = vmatpush2.bf16.msra.mxu0 %v507
    %558 = vmatprep.subr.bf16.mxu0 0
    %559 = vmatpush2.bf16.msra.mxu0 %v506
    %560 = vmatprep.subr.bf16.mxu0 0
    %561 = vmatpush2.bf16.msra.mxu0 %v505
    %562 = vmatprep.subr.bf16.mxu0 0
    %563 = vmatpush2.bf16.msra.mxu0 %v504
    %564 = vmatprep.subr.bf16.mxu0 0
    %565 = vmatpush2.bf16.msra.mxu0 %v503
    %566 = vmatprep.subr.bf16.mxu0 0
    %567 = vmatpush2.bf16.msra.mxu0 %v502
    %568 = vmatprep.subr.bf16.mxu0 0
    %569 = vmatpush2.bf16.msra.mxu0 %v501
    %570 = vmatprep.subr.bf16.mxu0 0
    %571 = vmatpush2.bf16.msra.mxu0 %v500
    %572 = vmatprep.mubr.bf16.mxu0 %v339
    %573 = vmatmul.mubr.bf16.gmra.mxu0 %v338
    %v574 = vpop.f32.mrf.mxu0
    %v575 = vadd.f32 %v394, %v574
    %v576 = vpop.f32.mrf.mxu0
    %v577 = vpop.f32.mrf.mxu0
    %v578 = vadd.f32 %v394, %v577
    %v579 = vpop.f32.mrf.mxu0
    %580 = vdwg.mxu0
    %581 = vmatprep.subr.bf16.mxu0 0
    %582 = vmatpush1.bf16.msra.mxu0 %v515
    %583 = vmatprep.subr.bf16.mxu0 0
    %584 = vmatpush1.bf16.msra.mxu0 %v514
    %585 = vmatprep.subr.bf16.mxu0 0
    %586 = vmatpush1.bf16.msra.mxu0 %v513
    %587 = vmatprep.subr.bf16.mxu0 0
    %588 = vmatpush1.bf16.msra.mxu0 %v512
    %589 = vmatprep.subr.bf16.mxu0 0
    %590 = vmatpush1.bf16.msra.mxu0 %v511
    %591 = vmatprep.subr.bf16.mxu0 0
    %592 = vmatpush1.bf16.msra.mxu0 %v510
    %593 = vmatprep.subr.bf16.mxu0 0
    %594 = vmatpush1.bf16.msra.mxu0 %v509
    %595 = vmatprep.subr.bf16.mxu0 0
    %596 = vmatpush1.bf16.msra.mxu0 %v508
    %597 = vmatprep.subr.bf16.mxu0 0
    %598 = vmatpush2.bf16.msra.mxu0 0
    %599 = vmatprep.subr.bf16.mxu0 0
    %600 = vmatpush2.bf16.msra.mxu0 0
    %601 = vmatprep.subr.bf16.mxu0 0
    %602 = vmatpush2.bf16.msra.mxu0 0
    %603 = vmatprep.subr.bf16.mxu0 0
    %604 = vmatpush2.bf16.msra.mxu0 0
    %605 = vmatprep.subr.bf16.mxu0 0
    %606 = vmatpush2.bf16.msra.mxu0 0
    %607 = vmatprep.subr.bf16.mxu0 0
    %608 = vmatpush2.bf16.msra.mxu0 0
    %609 = vmatprep.subr.bf16.mxu0 0
    %610 = vmatpush2.bf16.msra.mxu0 0
    %611 = vmatprep.subr.bf16.mxu0 0
    %612 = vmatpush2.bf16.msra.mxu0 0
    %613 = vmatprep.mubr.bf16.mxu0 0
    %614 = vmatmul.mubr.bf16.gmra.mxu0 %v340
    %v615 = vpop.f32.mrf.mxu0
    %v616 = vadd.f32 %v575, %v615
    %v617 = vpop.f32.mrf.mxu0
    %v618 = vpop.f32.mrf.mxu0
    %v619 = vadd.f32 %v578, %v618
    %v620 = vpop.f32.mrf.mxu0
    %621 = vdwg.mxu0
    %622 = vst [vmem:[#allocation8] sm:$0xff] %v616
    %623 = vst [vmem:[#allocation8 + $0x8] sm:$0xff] %v619
    // Predicated region
    $region34: #{tpu_custom_call.1} parent=1 // pred_check
      _
    $region35: #{tpu_custom_call.1} parent=1 // pred_check_branch
      %625 = sbr.rel (0) target = $region37
    $region36: #{tpu_custom_call.1} parent=1 // pred_region
      %s627 = ssub.s32 256, 256
      %628 = vsyncadd [#allocation4], %s627
      %s629 = sshll.u32 [#allocation8], 4
      %s630 = int_to_ptr.vmem [resolvable:$true] %s629
      %635 = dma.vmem_to_hbm [thread:$0]  %s630, 256, %s5, [#allocation4], 128, 128, 8
    $region37: #{tpu_custom_call.1} parent=1 // pred_fallthru
      _
    // Predicated region
    $region38: #{tpu_custom_call.1} parent=1 // pred_check
      _
    $region39: #{tpu_custom_call.1} parent=1 // pred_check_branch
      %637 = sbr.rel (0) target = $region41
    $region40: #{tpu_custom_call.1} parent=1 // pred_region
      %638 = dma.done [#allocation4], 256
    $region41: #{tpu_custom_call.1} parent=1 // pred_fallthru
      _
    %639 = vsyncpa [#allocation3], 1
    %640 = vsyncpa [#allocation6], 1
    %641 = vsyncpa [#allocation4], 1

</llo_original>
